<compile_context>
chip_gen: v7x
topology: tpu7x:2x2x1
jax: 0.10.0
libtpu: 0.0.40
codegen_flags: <defaults>
</compile_context>

<pallas_src>
import math
from functools import partial

import numpy as np
import jax
import jax.numpy as jnp
from jax import lax
from jax.experimental import pallas as pl
from jax.experimental.pallas import tpu as pltpu

_EPS = 1e-5  # PyTorch nn.LayerNorm default


# --------------------------------------------------------------------------
# Fused Pallas kernel: LN1 + attention + scramble + residual + LN2 + MLP
# --------------------------------------------------------------------------
def _layernorm(x, g, b):
    mean = jnp.mean(x, axis=-1, keepdims=True)
    var = jnp.mean((x - mean) ** 2, axis=-1, keepdims=True)
    return (x - mean) * lax.rsqrt(var + _EPS) * g + b


def _fused_block_kernel(x_ref, g1_ref, b1_ref, g2_ref, b2_ref,
                        w1_ref, bb1_ref, w2_ref, bb2_ref,
                        sel_ref, plcs_ref,
                        out_ref, xln_ref, *, L, D):
    x = x_ref[...]                                   # f32 already (ln_1 casts to f32)

    # ---- ln_1 ---------------------------------------------------------
    xln = _layernorm(x, g1_ref[...], b1_ref[...])
    xln_ref[...] = xln                               # exported for cache (k.detach())

    # ---- attention(q, q, q) computed ONCE (q == k == v on this path) ---
    scale = 1.0 / math.sqrt(D)
    s = lax.dot_general(xln, xln, (((1,), (1,)), ((), ())),
                        preferred_element_type=jnp.float32) * scale      # (L, L)
    m = jnp.max(s, axis=-1, keepdims=True)
    e = jnp.exp(s - m)
    denom = jnp.sum(e, axis=-1, keepdims=True)
    attn = e * pl.reciprocal(denom, approx=True)     # EUP vrcp, slot otherwise idle
    tt = jnp.dot(attn, xln, preferred_element_type=jnp.float32) + xln    # (L, D)

    # ---- scramble + (1+p) residual scale --------------------------------
    # Target: y[i, pp*L + q] = tt[q, i*c + pp]  (== reshape(tt.T, (L, D)))
    # Stage 1 (ONE stacked gather matmul, mask precomputed host-side):
    #   zs[pp*L + i, q] = tt[q, i*c + pp]          zs: (c*L, L)
    sel = sel_ref[...]                               # (c*L, D) 0/1 constant
    zs = lax.dot_general(sel, tt, (((1,), (1,)), ((), ())),
                         preferred_element_type=jnp.float32)
    # Stage 2: place row-block pp of zs into lane-block pp of y; the (1+p)
    # scale is folded into the placement matrix (plcs = (1+p) * I_D).
    c = D // L
    plcs = plcs_ref[...]                             # (D, D) = (c*L, D)
    parts = [
        jnp.dot(zs[pp * L:(pp + 1) * L, :], plcs[pp * L:(pp + 1) * L, :],
                preferred_element_type=jnp.float32)
        for pp in range(c)                           # independent, no serial chain
    ]
    y_scaled = parts[0]
    for t in parts[1:]:
        y_scaled = y_scaled + t

    # atten = attention(q,k,k) + selfatten*p == y*(1+p) because q == k == v here
    xr = xln + y_scaled

    # ---- ln_2 + MLP (Linear -> QuickGELU -> Linear) + residual ----------
    xn2 = _layernorm(xr, g2_ref[...], b2_ref[...])
    h = jnp.dot(xn2, w1_ref[...], preferred_element_type=jnp.float32) + bb1_ref[...]
    h = h * jax.nn.sigmoid(1.702 * h)                # QuickGELU
    out_ref[...] = xr + jnp.dot(h, w2_ref[...], preferred_element_type=jnp.float32) + bb2_ref[...]


# --------------------------------------------------------------------------
# pallas_call wrapper (no grid, whole arrays resident in VMEM)
# --------------------------------------------------------------------------
def fused_block_pallas(x2d, ln1_g, ln1_b, ln2_g, ln2_b, w1, b1, w2, b2, sel, plcs):
    L, D = x2d.shape
    H = w1.shape[1]
    c = D // L

    flops = int(4 * L * L * D            # scores + attn@v
                + 2 * c * L * L * D      # stacked gather matmul
                + 2 * c * L * L * D      # placement matmuls
                + 4 * L * D * H          # MLP matmuls
                + 20 * L * D)            # elementwise (LN / residual / gelu), rough
    transcendentals = int(L * L + L * H + 3 * L)
    bytes_accessed = int(4 * (3 * L * D + 4 * D + D * H + H + H * D + D + 2 * D * D))

    vmem = lambda: pl.BlockSpec(memory_space=pltpu.MemorySpace.VMEM)
    out2d, xln2d = pl.pallas_call(
        partial(_fused_block_kernel, L=L, D=D),
        out_shape=(jax.ShapeDtypeStruct((L, D), jnp.float32),   # block output
                   jax.ShapeDtypeStruct((L, D), jnp.float32)),  # ln_1(x) (for cache)
        in_specs=[vmem() for _ in range(11)],
        out_specs=(vmem(), vmem()),
        cost_estimate=pl.CostEstimate(flops=flops,
                                      transcendentals=transcendentals,
                                      bytes_accessed=bytes_accessed),
    )(x2d, ln1_g, ln1_b, ln2_g, ln2_b, w1, b1, w2, b2, sel, plcs)
    return out2d, xln2d


# One jitted entry point: the (L,1,D)<->(L,D) reshapes are free bitcasts under
# XLA and the whole forward is a single dispatch from Python.
@jax.jit
def _transformer_forward(x3d, ln1_g, ln1_b, ln2_g, ln2_b, w1, b1, w2, b2, sel, plcs):
    L, N, D = x3d.shape
    x2d = jnp.reshape(x3d.astype(jnp.float32), (L, D))          # N == 1
    out2d, xln2d = fused_block_pallas(
        x2d, ln1_g, ln1_b, ln2_g, ln2_b, w1, b1, w2, b2, sel, plcs)
    return jnp.reshape(out2d, (L, N, D)), jnp.reshape(xln2d, (L, N, D))


# --------------------------------------------------------------------------
# Module wrappers (parameter setup + host-side cache glue)
# --------------------------------------------------------------------------
class PallasResidualAttentionBlock:
    def __init__(self, d_model, p, attwindow, drop_rate, drop_attn_rate,
                 drop_qkv_rate, cache_keep_max_len, key):
        assert drop_rate == 0.0 and drop_attn_rate == 0.0 and drop_qkv_rate == 0.0, \
            "dropout is inference-disabled in this synthetic kernel"
        self.d_model = d_model
        self.p = p
        self.attnwindow = attwindow
        self.keep_max_len = cache_keep_max_len
        D, L = d_model, attwindow
        assert D % L == 0, "in-kernel scramble assumes width % attwindow == 0"  # TODO(synk): general case
        c = D // L

        k1, k2, k3, k4, k5 = jax.random.split(key, 5)
        # LayerNorms (PyTorch default init: weight=1, bias=0)
        self.ln1_g = jnp.ones((1, D), jnp.float32)
        self.ln1_b = jnp.zeros((1, D), jnp.float32)
        self.ln2_g = jnp.ones((1, D), jnp.float32)
        self.ln2_b = jnp.zeros((1, D), jnp.float32)
        # MLP weights stored pre-transposed as (in, out) so the kernel does x @ W.
        self.w1 = (0.02 * jax.random.normal(k1, (D, 4 * D))).astype(jnp.float32)
        self.b1 = jnp.zeros((1, 4 * D), jnp.float32)
        self.w2 = (0.02 * jax.random.normal(k2, (4 * D, D))).astype(jnp.float32)
        self.b2 = jnp.zeros((1, D), jnp.float32)

        # Precomputed scramble constants (perf feedback: no in-kernel iota/compare).
        #   sel[pp*L + i, r]  = 1  iff  r == i*c + pp          (gather matrix)
        #   plcs              = (1 + p) * I_D                  (placement + scale)
        sel_np = np.zeros((c * L, D), np.float32)
        for pp in range(c):
            for i in range(L):
                sel_np[pp * L + i, i * c + pp] = 1.0
        self.sel = jnp.asarray(sel_np)
        self.plcs = jnp.asarray((1.0 + float(p)) * np.eye(D, dtype=np.float32))

        # Parameters of the cached-memory path (shapes mirror the PyTorch
        # module; unused on the cold-cache path implemented here).
        self.compress_k_w = (0.02 * jax.random.normal(k3, (attwindow, attwindow, 3))).astype(jnp.float32)
        self.compress_cur_w = (0.02 * jax.random.normal(k4, (attwindow, attwindow, 3))).astype(jnp.float32)
        self.attenproj_w = (0.02 * jax.random.normal(k5, (256, 512))).astype(jnp.float32)
        self.attenproj_b = jnp.zeros((1, 512), jnp.float32)
        # caches (Python-level state, like the PyTorch module attributes)
        self.cached_k = []
        self.cached_time = []
        self.cached_video_names = []

    def forward(self, x_tuple, video_names):
        x, needclean = x_tuple
        if needclean == 1:
            self.cached_k = []
            self.cached_video_names = []
            return (x, 0)

        L, N, D = x.shape
        assert N == 1, "attention() in the reference squeezes dim 1; batch must be 1"

        # Single fused, jitted call: ln_1 + attention + scramble + residual + ln_2 + mlp
        out3d, xln3d = _transformer_forward(
            x, self.ln1_g, self.ln1_b, self.ln2_g, self.ln2_b,
            self.w1, self.b1, self.w2, self.b2, self.sel, self.plcs)

        # cache bookkeeping (mask_memory / mask_time are no-ops on an empty cache)
        self.cached_k.append(jax.lax.stop_gradient(xln3d))
        self.cached_time.append(1 if not self.cached_time else self.cached_time[-1] + 1)
        self.cached_video_names.append(video_names)
        if len(self.cached_k) > 1:
            # TODO(synk): cached-memory attention (Conv1d compression + attenproj +
            # Ebbinghaus eviction) not implemented; only the cold-cache call works.
            # NOTE: on that path attention(q,k,k) != attention(q,q,q), so the
            # single-attention dedup used in the fused kernel must be revisited.
            raise NotImplementedError("multi-call cached-memory path not implemented")

        return (out3d, 1)


class PallasTransformer:
    def __init__(self, width, layers, p, attwindow, drop_rate, drop_attn_rate,
                 drop_qkv_rate, cache_keep_max_len, key):
        self.width = width
        self.layers = layers
        self.resblock = PallasResidualAttentionBlock(
            width, p, attwindow, drop_rate, drop_attn_rate, drop_qkv_rate,
            cache_keep_max_len, key)

    def forward(self, x_tuple, video_names):
        return self.resblock.forward(x_tuple, video_names)


# --------------------------------------------------------------------------
# Pure-JAX reference (same math, no Pallas) for a correctness check
# --------------------------------------------------------------------------
def _ref_ln(x, g, b):
    m = jnp.mean(x, -1, keepdims=True)
    v = jnp.mean((x - m) ** 2, -1, keepdims=True)
    return (x - m) / jnp.sqrt(v + _EPS) * g + b


def reference_forward(block, x):
    L, N, D = x.shape
    xln = _ref_ln(x.astype(jnp.float32), block.ln1_g[0], block.ln1_b[0])
    q = xln[:, 0, :]
    s = (q @ q.T) * (1.0 / math.sqrt(D))
    a = jax.nn.softmax(s, axis=-1)
    tt = a @ q + q
    att = jnp.transpose(jnp.reshape(tt.T, (-1, L, D)), (1, 0, 2))
    att = att + att * block.p
    xr = xln + att
    h = _ref_ln(xr, block.ln2_g[0], block.ln2_b[0]) @ block.w1 + block.b1[0]
    h = h * jax.nn.sigmoid(1.702 * h)
    return xr + h @ block.w2 + block.b2[0]


# --------------------------------------------------------------------------
if __name__ == "__main__":
    key = jax.random.PRNGKey(0)
    pkey, xkey = jax.random.split(key)

    width = 32        # d_model
    attwindow = 8     # sequence length L (seq-first layout)
    model = PallasTransformer(width=width, layers=1, p=2, attwindow=attwindow,
                              drop_rate=0.0, drop_attn_rate=0.0,
                              drop_qkv_rate=0.0, cache_keep_max_len=4, key=pkey)

    x = jax.random.normal(xkey, (attwindow, 1, width), dtype=jnp.float32)
    video_names = ["video_0"]

    out, flag = model.forward((x, 0), video_names)   # needclean = 0
    out = jax.block_until_ready(out)

    ref = reference_forward(model.resblock, x)
    assert out.shape == (attwindow, 1, width)
    assert flag == 1
    # Tolerance slightly relaxed vs. rev 1 because the softmax normalization
    # now uses the approximate EUP reciprocal (few-ULP relative error).
    assert jnp.allclose(out, ref, atol=5e-3, rtol=5e-3), \
        f"max abs diff {jnp.max(jnp.abs(out - ref))}"

    print("KERNEL_OK")
</pallas_src>

<mosaic_0001>
module attributes {stable_mosaic.version = 11 : i64} {
  func.func @_fused_block_kernel(%arg0: memref<8x32xf32, #tpu.memory_space<vmem>>, %arg1: memref<1x32xf32, #tpu.memory_space<vmem>>, %arg2: memref<1x32xf32, #tpu.memory_space<vmem>>, %arg3: memref<1x32xf32, #tpu.memory_space<vmem>>, %arg4: memref<1x32xf32, #tpu.memory_space<vmem>>, %arg5: memref<32x128xf32, #tpu.memory_space<vmem>>, %arg6: memref<1x128xf32, #tpu.memory_space<vmem>>, %arg7: memref<128x32xf32, #tpu.memory_space<vmem>>, %arg8: memref<1x32xf32, #tpu.memory_space<vmem>>, %arg9: memref<32x32xf32, #tpu.memory_space<vmem>>, %arg10: memref<32x32xf32, #tpu.memory_space<vmem>>, %arg11: memref<8x32xf32, #tpu.memory_space<vmem>>, %arg12: memref<8x32xf32, #tpu.memory_space<vmem>>) attributes {dimension_semantics = [], scalar_prefetch = 0 : i64, scratch_operands = 0 : i64, tpu.core_type = #tpu.core_type<tc>} {
    %c0 = arith.constant 0 : index
    %c0_0 = arith.constant 0 : index
    %0 = vector.load %arg0[%c0, %c0_0] : memref<8x32xf32, #tpu.memory_space<vmem>>, vector<8x32xf32>
    %c0_1 = arith.constant 0 : index
    %c0_2 = arith.constant 0 : index
    %1 = vector.load %arg1[%c0_1, %c0_2] : memref<1x32xf32, #tpu.memory_space<vmem>>, vector<1x32xf32>
    %c0_3 = arith.constant 0 : index
    %c0_4 = arith.constant 0 : index
    %2 = vector.load %arg2[%c0_3, %c0_4] : memref<1x32xf32, #tpu.memory_space<vmem>>, vector<1x32xf32>
    %cst = arith.constant dense<0.000000e+00> : vector<8xf32>
    %3 = vector.multi_reduction <add>, %0, %cst [1] : vector<8x32xf32> to vector<8xf32>
    %4 = vector.shape_cast %3 : vector<8xf32> to vector<8x1xf32>
    %cst_5 = arith.constant 3.200000e+01 : f32
    %5 = vector.broadcast %cst_5 : f32 to vector<8x1xf32>
    %6 = arith.divf %4, %5 : vector<8x1xf32>
    %7 = vector.broadcast %6 : vector<8x1xf32> to vector<8x32xf32>
    %8 = arith.subf %0, %7 : vector<8x32xf32>
    %9 = arith.mulf %8, %8 : vector<8x32xf32>
    %cst_6 = arith.constant dense<0.000000e+00> : vector<8xf32>
    %10 = vector.multi_reduction <add>, %9, %cst_6 [1] : vector<8x32xf32> to vector<8xf32>
    %11 = vector.shape_cast %10 : vector<8xf32> to vector<8x1xf32>
    %cst_7 = arith.constant 3.200000e+01 : f32
    %12 = vector.broadcast %cst_7 : f32 to vector<8x1xf32>
    %13 = arith.divf %11, %12 : vector<8x1xf32>
    %14 = vector.broadcast %6 : vector<8x1xf32> to vector<8x32xf32>
    %15 = arith.subf %0, %14 : vector<8x32xf32>
    %cst_8 = arith.constant 9.99999974E-6 : f32
    %16 = vector.broadcast %cst_8 : f32 to vector<8x1xf32>
    %17 = arith.addf %13, %16 : vector<8x1xf32>
    %18 = math.rsqrt %17 : vector<8x1xf32>
    %19 = vector.broadcast %18 : vector<8x1xf32> to vector<8x32xf32>
    %20 = arith.mulf %15, %19 : vector<8x32xf32>
    %21 = vector.broadcast %1 : vector<1x32xf32> to vector<8x32xf32>
    %22 = arith.mulf %20, %21 : vector<8x32xf32>
    %23 = vector.broadcast %2 : vector<1x32xf32> to vector<8x32xf32>
    %24 = arith.addf %22, %23 : vector<8x32xf32>
    %c0_9 = arith.constant 0 : index
    %c0_10 = arith.constant 0 : index
    %25 = vector.load %arg12[%c0_9, %c0_10] : memref<8x32xf32, #tpu.memory_space<vmem>>, vector<8x32xf32>
    tpu.vector_store %arg12[%c0_9, %c0_10], %24 {strides = array<i32>} : memref<8x32xf32, #tpu.memory_space<vmem>>, vector<8x32xf32>,
    %cst_11 = arith.constant dense<0.000000e+00> : vector<8x8xf32>
    %26 = tpu.matmul %24, %24, %cst_11 {dimension_numbers = #tpu.dot_dimension_numbers<[1], [1], [0], [0], [0, 0, 1, 0], [], []>} : vector<8x32xf32>, vector<8x32xf32>, vector<8x8xf32> -> vector<8x8xf32>
    %cst_12 = arith.constant 0.176776692 : f32
    %27 = vector.broadcast %cst_12 : f32 to vector<8x8xf32>
    %28 = arith.mulf %26, %27 : vector<8x8xf32>
    %cst_13 = arith.constant dense<0xFF800000> : vector<8xf32>
    %29 = vector.multi_reduction <maximumf>, %28, %cst_13 [1] : vector<8x8xf32> to vector<8xf32>
    %30 = vector.shape_cast %29 : vector<8xf32> to vector<8x1xf32>
    %31 = vector.broadcast %30 : vector<8x1xf32> to vector<8x8xf32>
    %32 = arith.subf %28, %31 : vector<8x8xf32>
    %33 = math.exp %32 : vector<8x8xf32>
    %cst_14 = arith.constant dense<0.000000e+00> : vector<8xf32>
    %34 = vector.multi_reduction <add>, %33, %cst_14 [1] : vector<8x8xf32> to vector<8xf32>
    %35 = vector.shape_cast %34 : vector<8xf32> to vector<8x1xf32>
    %36 = tpu.reciprocal %35 {approx = true} : vector<8x1xf32> -> vector<8x1xf32>
    %37 = vector.broadcast %36 : vector<8x1xf32> to vector<8x8xf32>
    %38 = arith.mulf %33, %37 : vector<8x8xf32>
    %cst_15 = arith.constant dense<0.000000e+00> : vector<8x32xf32>
    %39 = tpu.matmul %38, %24, %cst_15 {dimension_numbers = #tpu.dot_dimension_numbers<[1], [0], [0], [1], [0, 0, 1, 1], [], []>} : vector<8x8xf32>, vector<8x32xf32>, vector<8x32xf32> -> vector<8x32xf32>
    %40 = arith.addf %39, %24 : vector<8x32xf32>
    %c0_16 = arith.constant 0 : index
    %c0_17 = arith.constant 0 : index
    %41 = vector.load %arg9[%c0_16, %c0_17] : memref<32x32xf32, #tpu.memory_space<vmem>>, vector<32x32xf32>
    %cst_18 = arith.constant dense<0.000000e+00> : vector<32x8xf32>
    %42 = tpu.matmul %41, %40, %cst_18 {dimension_numbers = #tpu.dot_dimension_numbers<[1], [1], [0], [0], [0, 0, 1, 0], [], []>} : vector<32x32xf32>, vector<8x32xf32>, vector<32x8xf32> -> vector<32x8xf32>
    %c0_19 = arith.constant 0 : index
    %c0_20 = arith.constant 0 : index
    %43 = vector.load %arg10[%c0_19, %c0_20] : memref<32x32xf32, #tpu.memory_space<vmem>>, vector<32x32xf32>
    %44 = vector.extract_strided_slice %42 {offsets = [0, 0], sizes = [8, 8], strides = [1, 1]} : vector<32x8xf32> to vector<8x8xf32>
    %45 = vector.extract_strided_slice %43 {offsets = [0, 0], sizes = [8, 32], strides = [1, 1]} : vector<32x32xf32> to vector<8x32xf32>
    %cst_21 = arith.constant dense<0.000000e+00> : vector<8x32xf32>
    %46 = tpu.matmul %44, %45, %cst_21 {dimension_numbers = #tpu.dot_dimension_numbers<[1], [0], [0], [1], [0, 0, 1, 1], [], []>} : vector<8x8xf32>, vector<8x32xf32>, vector<8x32xf32> -> vector<8x32xf32>
    %47 = vector.extract_strided_slice %42 {offsets = [8, 0], sizes = [8, 8], strides = [1, 1]} : vector<32x8xf32> to vector<8x8xf32>
    %48 = vector.extract_strided_slice %43 {offsets = [8, 0], sizes = [8, 32], strides = [1, 1]} : vector<32x32xf32> to vector<8x32xf32>
    %cst_22 = arith.constant dense<0.000000e+00> : vector<8x32xf32>
    %49 = tpu.matmul %47, %48, %cst_22 {dimension_numbers = #tpu.dot_dimension_numbers<[1], [0], [0], [1], [0, 0, 1, 1], [], []>} : vector<8x8xf32>, vector<8x32xf32>, vector<8x32xf32> -> vector<8x32xf32>
    %50 = vector.extract_strided_slice %42 {offsets = [16, 0], sizes = [8, 8], strides = [1, 1]} : vector<32x8xf32> to vector<8x8xf32>
    %51 = vector.extract_strided_slice %43 {offsets = [16, 0], sizes = [8, 32], strides = [1, 1]} : vector<32x32xf32> to vector<8x32xf32>
    %cst_23 = arith.constant dense<0.000000e+00> : vector<8x32xf32>
    %52 = tpu.matmul %50, %51, %cst_23 {dimension_numbers = #tpu.dot_dimension_numbers<[1], [0], [0], [1], [0, 0, 1, 1], [], []>} : vector<8x8xf32>, vector<8x32xf32>, vector<8x32xf32> -> vector<8x32xf32>
    %53 = vector.extract_strided_slice %42 {offsets = [24, 0], sizes = [8, 8], strides = [1, 1]} : vector<32x8xf32> to vector<8x8xf32>
    %54 = vector.extract_strided_slice %43 {offsets = [24, 0], sizes = [8, 32], strides = [1, 1]} : vector<32x32xf32> to vector<8x32xf32>
    %cst_24 = arith.constant dense<0.000000e+00> : vector<8x32xf32>
    %55 = tpu.matmul %53, %54, %cst_24 {dimension_numbers = #tpu.dot_dimension_numbers<[1], [0], [0], [1], [0, 0, 1, 1], [], []>} : vector<8x8xf32>, vector<8x32xf32>, vector<8x32xf32> -> vector<8x32xf32>
    %56 = arith.addf %46, %49 : vector<8x32xf32>
    %57 = arith.addf %56, %52 : vector<8x32xf32>
    %58 = arith.addf %57, %55 : vector<8x32xf32>
    %59 = arith.addf %24, %58 : vector<8x32xf32>
    %c0_25 = arith.constant 0 : index
    %c0_26 = arith.constant 0 : index
    %60 = vector.load %arg3[%c0_25, %c0_26] : memref<1x32xf32, #tpu.memory_space<vmem>>, vector<1x32xf32>
    %c0_27 = arith.constant 0 : index
    %c0_28 = arith.constant 0 : index
    %61 = vector.load %arg4[%c0_27, %c0_28] : memref<1x32xf32, #tpu.memory_space<vmem>>, vector<1x32xf32>
    %cst_29 = arith.constant dense<0.000000e+00> : vector<8xf32>
    %62 = vector.multi_reduction <add>, %59, %cst_29 [1] : vector<8x32xf32> to vector<8xf32>
    %63 = vector.shape_cast %62 : vector<8xf32> to vector<8x1xf32>
    %cst_30 = arith.constant 3.200000e+01 : f32
    %64 = vector.broadcast %cst_30 : f32 to vector<8x1xf32>
    %65 = arith.divf %63, %64 : vector<8x1xf32>
    %66 = vector.broadcast %65 : vector<8x1xf32> to vector<8x32xf32>
    %67 = arith.subf %59, %66 : vector<8x32xf32>
    %68 = arith.mulf %67, %67 : vector<8x32xf32>
    %cst_31 = arith.constant dense<0.000000e+00> : vector<8xf32>
    %69 = vector.multi_reduction <add>, %68, %cst_31 [1] : vector<8x32xf32> to vector<8xf32>
    %70 = vector.shape_cast %69 : vector<8xf32> to vector<8x1xf32>
    %cst_32 = arith.constant 3.200000e+01 : f32
    %71 = vector.broadcast %cst_32 : f32 to vector<8x1xf32>
    %72 = arith.divf %70, %71 : vector<8x1xf32>
    %73 = vector.broadcast %65 : vector<8x1xf32> to vector<8x32xf32>
    %74 = arith.subf %59, %73 : vector<8x32xf32>
    %cst_33 = arith.constant 9.99999974E-6 : f32
    %75 = vector.broadcast %cst_33 : f32 to vector<8x1xf32>
    %76 = arith.addf %72, %75 : vector<8x1xf32>
    %77 = math.rsqrt %76 : vector<8x1xf32>
    %78 = vector.broadcast %77 : vector<8x1xf32> to vector<8x32xf32>
    %79 = arith.mulf %74, %78 : vector<8x32xf32>
    %80 = vector.broadcast %60 : vector<1x32xf32> to vector<8x32xf32>
    %81 = arith.mulf %79, %80 : vector<8x32xf32>
    %82 = vector.broadcast %61 : vector<1x32xf32> to vector<8x32xf32>
    %83 = arith.addf %81, %82 : vector<8x32xf32>
    %c0_34 = arith.constant 0 : index
    %c0_35 = arith.constant 0 : index
    %84 = vector.load %arg5[%c0_34, %c0_35] : memref<32x128xf32, #tpu.memory_space<vmem>>, vector<32x128xf32>
    %cst_36 = arith.constant dense<0.000000e+00> : vector<8x128xf32>
    %85 = tpu.matmul %83, %84, %cst_36 {dimension_numbers = #tpu.dot_dimension_numbers<[1], [0], [0], [1], [0, 0, 1, 1], [], []>} : vector<8x32xf32>, vector<32x128xf32>, vector<8x128xf32> -> vector<8x128xf32>
    %c0_37 = arith.constant 0 : index
    %c0_38 = arith.constant 0 : index
    %86 = vector.load %arg6[%c0_37, %c0_38] : memref<1x128xf32, #tpu.memory_space<vmem>>, vector<1x128xf32>
    %87 = vector.broadcast %86 : vector<1x128xf32> to vector<8x128xf32>
    %88 = arith.addf %85, %87 : vector<8x128xf32>
    %cst_39 = arith.constant 1.702000e+00 : f32
    %89 = vector.broadcast %cst_39 : f32 to vector<8x128xf32>
    %90 = arith.mulf %89, %88 : vector<8x128xf32>
    %91 = arith.negf %90 : vector<8x128xf32>
    %92 = math.exp %91 : vector<8x128xf32>
    %cst_40 = arith.constant 1.000000e+00 : f32
    %93 = vector.broadcast %cst_40 : f32 to vector<8x128xf32>
    %94 = arith.addf %93, %92 : vector<8x128xf32>
    %95 = arith.divf %93, %94 : vector<8x128xf32>
    %96 = arith.mulf %88, %95 : vector<8x128xf32>
    %c0_41 = arith.constant 0 : index
    %c0_42 = arith.constant 0 : index
    %97 = vector.load %arg7[%c0_41, %c0_42] : memref<128x32xf32, #tpu.memory_space<vmem>>, vector<128x32xf32>
    %cst_43 = arith.constant dense<0.000000e+00> : vector<8x32xf32>
    %98 = tpu.matmul %96, %97, %cst_43 {dimension_numbers = #tpu.dot_dimension_numbers<[1], [0], [0], [1], [0, 0, 1, 1], [], []>} : vector<8x128xf32>, vector<128x32xf32>, vector<8x32xf32> -> vector<8x32xf32>
    %99 = arith.addf %59, %98 : vector<8x32xf32>
    %c0_44 = arith.constant 0 : index
    %c0_45 = arith.constant 0 : index
    %100 = vector.load %arg8[%c0_44, %c0_45] : memref<1x32xf32, #tpu.memory_space<vmem>>, vector<1x32xf32>
    %101 = vector.broadcast %100 : vector<1x32xf32> to vector<8x32xf32>
    %102 = arith.addf %99, %101 : vector<8x32xf32>
    %c0_46 = arith.constant 0 : index
    %c0_47 = arith.constant 0 : index
    %103 = vector.load %arg11[%c0_46, %c0_47] : memref<8x32xf32, #tpu.memory_space<vmem>>, vector<8x32xf32>
    tpu.vector_store %arg11[%c0_46, %c0_47], %102 {strides = array<i32>} : memref<8x32xf32, #tpu.memory_space<vmem>>, vector<8x32xf32>,
    return
  }
}

</mosaic_0001>

<llo_original>
// kernel: _transformer_forward.1
$region0: #{_transformer_forward.1}
  #allocation0 [shape = 'u32[]', space=smem, size = 0x4, offset = 0x4, fixed_abs, tag = 'smem constant byte address 0x4 - core index']
  #allocation1 [shape = 'u32[144,128]{1,0:T(1,128)}', space=vmem, size = 0x12000, scoped, tag = 'internal scratch']
  %s0 = inlined_call_operand.vmem [shape: f32[8,32], index: 0, kind: input, shape index: {}]
  %s1 = inlined_call_operand.vmem [shape: f32[1,32], index: 1, kind: input, shape index: {}]
  %s2 = inlined_call_operand.vmem [shape: f32[1,32], index: 2, kind: input, shape index: {}]
  %s3 = inlined_call_operand.vmem [shape: f32[1,32], index: 3, kind: input, shape index: {}]
  %s4 = inlined_call_operand.vmem [shape: f32[1,32], index: 4, kind: input, shape index: {}]
  %s5 = inlined_call_operand.vmem [shape: f32[32,128], index: 5, kind: input, shape index: {}]
  %s6 = inlined_call_operand.vmem [shape: f32[1,128], index: 6, kind: input, shape index: {}]
  %s7 = inlined_call_operand.vmem [shape: f32[128,32], index: 7, kind: input, shape index: {}]
  %s8 = inlined_call_operand.vmem [shape: f32[1,32], index: 8, kind: input, shape index: {}]
  %s9 = inlined_call_operand.vmem [shape: f32[32,32], index: 9, kind: input, shape index: {}]
  %s10 = inlined_call_operand.vmem [shape: f32[32,32], index: 10, kind: input, shape index: {}]
  %s11 = inlined_call_operand.hbm [shape: f32[8,32], index: 11, kind: output, shape index: {0}]
  %s12 = inlined_call_operand.hbm [shape: f32[8,32], index: 12, kind: output, shape index: {1}]
  %13 = xla_tuple %s11, %s12
  %s14 = sld [smem:[#allocation0]]
  $region62: #{_transformer_forward.1} parent=0
    _
  %s16 = ssub.s32 1, %s14
  %s17 = scalar_select 0, %s16, %s14
  $region1: #{_transformer_forward.1} parent=0
    #allocation2 [shape = 'u8[4096]{0}', space=vmem, size = 0x1000, scoped, tag = 'output window, operand 0, single buffered']
    #allocation3 [shape = 's32[1]{0}', space=sflag, size = 0x4, scoped, tag = 'scoped memory for _transformer_forward.1']
    #allocation4 [shape = 'u8[4096]{0}', space=vmem, size = 0x1000, scoped, tag = 'output window, operand 1, single buffered']
    #allocation5 [shape = 's32[1]{0}', space=sflag, size = 0x4, scoped, tag = 'scoped memory for _transformer_forward.1']
    %18 = vsyncpa [#allocation3], 0
    %19 = vsyncpa [#allocation5], 0
    // Predicated region
    $region2: #{_transformer_forward.1} parent=1 // pred_check
      _
    $region3: #{_transformer_forward.1} parent=1 // pred_check_branch
      %21 = sbr.rel (0) target = $region5
    $region4: #{_transformer_forward.1} parent=1 // pred_region
      _
    $region5: #{_transformer_forward.1} parent=1 // pred_fallthru
      _
    // Predicated region
    $region6: #{_transformer_forward.1} parent=1 // pred_check
      _
    $region7: #{_transformer_forward.1} parent=1 // pred_check_branch
      %23 = sbr.rel (0) target = $region9
    $region8: #{_transformer_forward.1} parent=1 // pred_region
      _
    $region9: #{_transformer_forward.1} parent=1 // pred_fallthru
      _
    // Predicated region
    $region10: #{_transformer_forward.1} parent=1 // pred_check
      _
    $region11: #{_transformer_forward.1} parent=1 // pred_check_branch
      %25 = sbr.rel (0) target = $region13
    $region12: #{_transformer_forward.1} parent=1 // pred_region
      _
    $region13: #{_transformer_forward.1} parent=1 // pred_fallthru
      _
    // Predicated region
    $region14: #{_transformer_forward.1} parent=1 // pred_check
      _
    $region15: #{_transformer_forward.1} parent=1 // pred_check_branch
      %27 = sbr.rel (0) target = $region17
    $region16: #{_transformer_forward.1} parent=1 // pred_region
      _
    $region17: #{_transformer_forward.1} parent=1 // pred_fallthru
      _
    // Predicated region
    $region18: #{_transformer_forward.1} parent=1 // pred_check
      _
    $region19: #{_transformer_forward.1} parent=1 // pred_check_branch
      %29 = sbr.rel (0) target = $region21
    $region20: #{_transformer_forward.1} parent=1 // pred_region
      _
    $region21: #{_transformer_forward.1} parent=1 // pred_fallthru
      _
    // Predicated region
    $region22: #{_transformer_forward.1} parent=1 // pred_check
      _
    $region23: #{_transformer_forward.1} parent=1 // pred_check_branch
      %31 = sbr.rel (0) target = $region25
    $region24: #{_transformer_forward.1} parent=1 // pred_region
      _
    $region25: #{_transformer_forward.1} parent=1 // pred_fallthru
      _
    // Predicated region
    $region26: #{_transformer_forward.1} parent=1 // pred_check
      _
    $region27: #{_transformer_forward.1} parent=1 // pred_check_branch
      %33 = sbr.rel (0) target = $region29
    $region28: #{_transformer_forward.1} parent=1 // pred_region
      _
    $region29: #{_transformer_forward.1} parent=1 // pred_fallthru
      _
    // Predicated region
    $region30: #{_transformer_forward.1} parent=1 // pred_check
      _
    $region31: #{_transformer_forward.1} parent=1 // pred_check_branch
      %35 = sbr.rel (0) target = $region33
    $region32: #{_transformer_forward.1} parent=1 // pred_region
      _
    $region33: #{_transformer_forward.1} parent=1 // pred_fallthru
      _
    // Predicated region
    $region34: #{_transformer_forward.1} parent=1 // pred_check
      _
    $region35: #{_transformer_forward.1} parent=1 // pred_check_branch
      %37 = sbr.rel (0) target = $region37
    $region36: #{_transformer_forward.1} parent=1 // pred_region
      _
    $region37: #{_transformer_forward.1} parent=1 // pred_fallthru
      _
    // Predicated region
    $region38: #{_transformer_forward.1} parent=1 // pred_check
      _
    $region39: #{_transformer_forward.1} parent=1 // pred_check_branch
      %39 = sbr.rel (0) target = $region41
    $region40: #{_transformer_forward.1} parent=1 // pred_region
      _
    $region41: #{_transformer_forward.1} parent=1 // pred_fallthru
      _
    // Predicated region
    $region42: #{_transformer_forward.1} parent=1 // pred_check
      _
    $region43: #{_transformer_forward.1} parent=1 // pred_check_branch
      %41 = sbr.rel (0) target = $region45
    $region44: #{_transformer_forward.1} parent=1 // pred_region
      _
    $region45: #{_transformer_forward.1} parent=1 // pred_fallthru
      _
    %v42 = vld [vmem:[%s0] sm:$0xff]
    %v43 = vld [vmem:[%s1] sm:$0x1]
    %v44 = vld [vmem:[%s2] sm:$0x1]
    %vm45 = vcmask 261120
    %v46 = vsel %vm45, %v42, 0.0
    %47 = vadd.xlane.f32.xlu0 %v46
    %v48 = vpop.xlane.xlu0 %47
    %v49 = vrcp.pop 32.0
    %v50 = vmul.f32 %v48, %v49
    %v51 = vsub.f32 %v42, %v50
    %v52 = vmul.f32 %v51, %v51
    %v53 = vsel %vm45, %v52, 0.0
    %54 = vadd.xlane.f32.xlu0 %v53
    %v55 = vpop.xlane.xlu0 %54
    %v56 = vmul.f32 %v55, %v49
    %v57 = vadd.f32 %v56, 1e-05
    %v58 = vrsqrt.pop %v57
    %v59 = vmul.f32 %v51, %v58
    %v61 = vlaneseq
    %v62 = vshrl.u32 %v61, 7
    %v63 = vsub.s32 0, %v62
    %v64 = vrot.slane %v43, %v63
    %v66 = vmul.f32 %v59, %v64
    %v68 = vlaneseq
    %v69 = vshrl.u32 %v68, 7
    %v70 = vsub.s32 0, %v69
    %v71 = vrot.slane %v44, %v70
    %v73 = vadd.f32 %v66, %v71
    %74 = vst.msk [vmem:[#allocation4] sm:$0xff] %vm45, %v73
    %v76 = vsel %vm45, %v73, 0
    %78 = vmatprep.subr.mxu0 0.0
    %79 = vmatpush1.xpose.msra.mxu0 %v76
    %80 = vmatprep.subr.mxu0 0.0
    %81 = vmatpush1.xpose.msra.mxu0 0.0
    %82 = vmatprep.subr.mxu0 0.0
    %83 = vmatpush1.xpose.msra.mxu0 0.0
    %84 = vmatprep.subr.mxu0 0.0
    %85 = vmatpush1.xpose.msra.mxu0 0.0
    %86 = vmatprep.subr.mxu0 0.0
    %87 = vmatpush1.xpose.msra.mxu0 0.0
    %88 = vmatprep.subr.mxu0 0.0
    %89 = vmatpush1.xpose.msra.mxu0 0.0
    %90 = vmatprep.subr.mxu0 0.0
    %91 = vmatpush1.xpose.msra.mxu0 0.0
    %92 = vmatprep.subr.mxu0 0.0
    %93 = vmatpush1.xpose.msra.mxu0 0.0
    %94 = vmatprep.subr.mxu0 0.0
    %95 = vmatpush1.xpose.msra.mxu0 0.0
    %96 = vmatprep.subr.mxu0 0.0
    %97 = vmatpush1.xpose.msra.mxu0 0.0
    %98 = vmatprep.subr.mxu0 0.0
    %99 = vmatpush1.xpose.msra.mxu0 0.0
    %100 = vmatprep.subr.mxu0 0.0
    %101 = vmatpush1.xpose.msra.mxu0 0.0
    %102 = vmatprep.subr.mxu0 0.0
    %103 = vmatpush1.xpose.msra.mxu0 0.0
    %104 = vmatprep.subr.mxu0 0.0
    %105 = vmatpush1.xpose.msra.mxu0 0.0
    %106 = vmatprep.subr.mxu0 0.0
    %107 = vmatpush1.xpose.msra.mxu0 0.0
    %108 = vmatprep.subr.mxu0 0.0
    %109 = vmatpush1.xpose.msra.mxu0 0.0
    %110 = vmatprep.subr.mxu0 0.0
    %111 = vmatpush1.xpose.msra.mxu0 0.0
    %112 = vmatprep.subr.mxu0 0.0
    %113 = vmatpush1.xpose.msra.mxu0 0.0
    %114 = vmatprep.subr.mxu0 0.0
    %115 = vmatpush1.xpose.msra.mxu0 0.0
    %116 = vmatprep.subr.mxu0 0.0
    %117 = vmatpush1.xpose.msra.mxu0 0.0
    %118 = vmatprep.subr.mxu0 0.0
    %119 = vmatpush1.xpose.msra.mxu0 0.0
    %120 = vmatprep.subr.mxu0 0.0
    %121 = vmatpush1.xpose.msra.mxu0 0.0
    %122 = vmatprep.subr.mxu0 0.0
    %123 = vmatpush1.xpose.msra.mxu0 0.0
    %124 = vmatprep.subr.mxu0 0.0
    %125 = vmatpush1.xpose.msra.mxu0 0.0
    %126 = vmatprep.subr.mxu0 0.0
    %127 = vmatpush1.xpose.msra.mxu0 0.0
    %128 = vmatprep.subr.mxu0 0.0
    %129 = vmatpush1.xpose.msra.mxu0 0.0
    %130 = vmatprep.subr.mxu0 0.0
    %131 = vmatpush1.xpose.msra.mxu0 0.0
    %132 = vmatprep.subr.mxu0 0.0
    %133 = vmatpush1.xpose.msra.mxu0 0.0
    %134 = vmatprep.subr.mxu0 0.0
    %135 = vmatpush1.xpose.msra.mxu0 0.0
    %136 = vmatprep.subr.mxu0 0.0
    %137 = vmatpush1.xpose.msra.mxu0 0.0
    %138 = vmatprep.subr.mxu0 0.0
    %139 = vmatpush1.xpose.msra.mxu0 0.0
    %140 = vmatprep.subr.mxu0 0.0
    %141 = vmatpush1.xpose.msra.mxu0 0.0
    %142 = vmatprep.mubr.f32.mxu0 0.0
    %143 = vmatmul.mubr.f32.gmra.mrb[0].mxu0 %v76
    %v144 = vpop.f32.mrb[0].mxu0
    %v145 = vadd.f32 0.0, %v144
    %v146 = vpop.f32.mrb[0].mxu0
    %147 = vdwg.mxu0
    %v148 = vmul.f32 %v145, 0.17677669
    %vm149 = vcmask 64512
    %v150 = vsel %vm149, %v148, -inf
    %151 = vmax.xlane.f32.xlu0 %v150
    %v152 = vpop.xlane.xlu0 %151
    %v153 = vsub.f32 %v148, %v152
    %v154 = vmul.f32 %v153, 1.442695
    %v155 = vpow.pop %v154
    %v156 = vsel %vm149, %v155, 0.0
    %157 = vadd.xlane.f32.xlu0 %v156
    %v158 = vpop.xlane.xlu0 %157
    %v159 = vrcp.pop %v158
    %v160 = vmul.f32 %v155, %v159
    %v162 = vsel %vm149, %v160, 0
    %164 = vmatprep.subr.mxu0 0.0
    %165 = vmatpush1.msra.mxu0 %v73
    %166 = vmatprep.subr.mxu0 0.0
    %167 = vmatpush1.msra.mxu0 0.0
    %168 = vmatprep.subr.mxu0 0.0
    %169 = vmatpush1.msra.mxu0 0.0
    %170 = vmatprep.subr.mxu0 0.0
    %171 = vmatpush1.msra.mxu0 0.0
    %172 = vmatprep.subr.mxu0 0.0
    %173 = vmatpush1.msra.mxu0 0.0
    %174 = vmatprep.subr.mxu0 0.0
    %175 = vmatpush1.msra.mxu0 0.0
    %176 = vmatprep.subr.mxu0 0.0
    %177 = vmatpush1.msra.mxu0 0.0
    %178 = vmatprep.subr.mxu0 0.0
    %179 = vmatpush1.msra.mxu0 0.0
    %180 = vmatprep.subr.mxu0 0.0
    %181 = vmatpush1.msra.mxu0 0.0
    %182 = vmatprep.subr.mxu0 0.0
    %183 = vmatpush1.msra.mxu0 0.0
    %184 = vmatprep.subr.mxu0 0.0
    %185 = vmatpush1.msra.mxu0 0.0
    %186 = vmatprep.subr.mxu0 0.0
    %187 = vmatpush1.msra.mxu0 0.0
    %188 = vmatprep.subr.mxu0 0.0
    %189 = vmatpush1.msra.mxu0 0.0
    %190 = vmatprep.subr.mxu0 0.0
    %191 = vmatpush1.msra.mxu0 0.0
    %192 = vmatprep.subr.mxu0 0.0
    %193 = vmatpush1.msra.mxu0 0.0
    %194 = vmatprep.subr.mxu0 0.0
    %195 = vmatpush1.msra.mxu0 0.0
    %196 = vmatprep.subr.mxu0 0.0
    %197 = vmatpush1.msra.mxu0 0.0
    %198 = vmatprep.subr.mxu0 0.0
    %199 = vmatpush1.msra.mxu0 0.0
    %200 = vmatprep.subr.mxu0 0.0
    %201 = vmatpush1.msra.mxu0 0.0
    %202 = vmatprep.subr.mxu0 0.0
    %203 = vmatpush1.msra.mxu0 0.0
    %204 = vmatprep.subr.mxu0 0.0
    %205 = vmatpush1.msra.mxu0 0.0
    %206 = vmatprep.subr.mxu0 0.0
    %207 = vmatpush1.msra.mxu0 0.0
    %208 = vmatprep.subr.mxu0 0.0
    %209 = vmatpush1.msra.mxu0 0.0
    %210 = vmatprep.subr.mxu0 0.0
    %211 = vmatpush1.msra.mxu0 0.0
    %212 = vmatprep.subr.mxu0 0.0
    %213 = vmatpush1.msra.mxu0 0.0
    %214 = vmatprep.subr.mxu0 0.0
    %215 = vmatpush1.msra.mxu0 0.0
    %216 = vmatprep.subr.mxu0 0.0
    %217 = vmatpush1.msra.mxu0 0.0
    %218 = vmatprep.subr.mxu0 0.0
    %219 = vmatpush1.msra.mxu0 0.0
    %220 = vmatprep.subr.mxu0 0.0
    %221 = vmatpush1.msra.mxu0 0.0
    %222 = vmatprep.subr.mxu0 0.0
    %223 = vmatpush1.msra.mxu0 0.0
    %224 = vmatprep.subr.mxu0 0.0
    %225 = vmatpush1.msra.mxu0 0.0
    %226 = vmatprep.subr.mxu0 0.0
    %227 = vmatpush1.msra.mxu0 0.0
    %228 = vmatprep.mubr.f32.mxu0 0.0
    %229 = vmatmul.mubr.f32.gmra.mrb[0].mxu0 %v162
    %v230 = vpop.f32.mrb[0].mxu0
    %v231 = vadd.f32 %v73, %v230
    %v232 = vpop.f32.mrb[0].mxu0
    %233 = vdwg.mxu0
    %v234 = vld [vmem:[%s9] sm:$0xff]
    %v235 = vld [vmem:[%s9 + $0x8] sm:$0xff]
    %v236 = vld [vmem:[%s9 + $0x10] sm:$0xff]
    %v237 = vld [vmem:[%s9 + $0x18] sm:$0xff]
    %v239 = vsel %vm45, %v234, 0
    %v242 = vsel %vm45, %v235, 0
    %v245 = vsel %vm45, %v236, 0
    %v248 = vsel %vm45, %v237, 0
    %v251 = vsel %vm45, %v231, 0
    %253 = vmatprep.subr.mxu0 0.0
    %254 = vmatpush1.xpose.msra.mxu0 %v251
    %255 = vmatprep.subr.mxu0 0.0
    %256 = vmatpush1.xpose.msra.mxu0 0.0
    %257 = vmatprep.subr.mxu0 0.0
    %258 = vmatpush1.xpose.msra.mxu0 0.0
    %259 = vmatprep.subr.mxu0 0.0
    %260 = vmatpush1.xpose.msra.mxu0 0.0
    %261 = vmatprep.subr.mxu0 0.0
    %262 = vmatpush1.xpose.msra.mxu0 0.0
    %263 = vmatprep.subr.mxu0 0.0
    %264 = vmatpush1.xpose.msra.mxu0 0.0
    %265 = vmatprep.subr.mxu0 0.0
    %266 = vmatpush1.xpose.msra.mxu0 0.0
    %267 = vmatprep.subr.mxu0 0.0
    %268 = vmatpush1.xpose.msra.mxu0 0.0
    %269 = vmatprep.subr.mxu0 0.0
    %270 = vmatpush1.xpose.msra.mxu0 0.0
    %271 = vmatprep.subr.mxu0 0.0
    %272 = vmatpush1.xpose.msra.mxu0 0.0
    %273 = vmatprep.subr.mxu0 0.0
    %274 = vmatpush1.xpose.msra.mxu0 0.0
    %275 = vmatprep.subr.mxu0 0.0
    %276 = vmatpush1.xpose.msra.mxu0 0.0
    %277 = vmatprep.subr.mxu0 0.0
    %278 = vmatpush1.xpose.msra.mxu0 0.0
    %279 = vmatprep.subr.mxu0 0.0
    %280 = vmatpush1.xpose.msra.mxu0 0.0
    %281 = vmatprep.subr.mxu0 0.0
    %282 = vmatpush1.xpose.msra.mxu0 0.0
    %283 = vmatprep.subr.mxu0 0.0
    %284 = vmatpush1.xpose.msra.mxu0 0.0
    %285 = vmatprep.subr.mxu0 0.0
    %286 = vmatpush1.xpose.msra.mxu0 0.0
    %287 = vmatprep.subr.mxu0 0.0
    %288 = vmatpush1.xpose.msra.mxu0 0.0
    %289 = vmatprep.subr.mxu0 0.0
    %290 = vmatpush1.xpose.msra.mxu0 0.0
    %291 = vmatprep.subr.mxu0 0.0
    %292 = vmatpush1.xpose.msra.mxu0 0.0
    %293 = vmatprep.subr.mxu0 0.0
    %294 = vmatpush1.xpose.msra.mxu0 0.0
    %295 = vmatprep.subr.mxu0 0.0
    %296 = vmatpush1.xpose.msra.mxu0 0.0
    %297 = vmatprep.subr.mxu0 0.0
    %298 = vmatpush1.xpose.msra.mxu0 0.0
    %299 = vmatprep.subr.mxu0 0.0
    %300 = vmatpush1.xpose.msra.mxu0 0.0
    %301 = vmatprep.subr.mxu0 0.0
    %302 = vmatpush1.xpose.msra.mxu0 0.0
    %303 = vmatprep.subr.mxu0 0.0
    %304 = vmatpush1.xpose.msra.mxu0 0.0
    %305 = vmatprep.subr.mxu0 0.0
    %306 = vmatpush1.xpose.msra.mxu0 0.0
    %307 = vmatprep.subr.mxu0 0.0
    %308 = vmatpush1.xpose.msra.mxu0 0.0
    %309 = vmatprep.subr.mxu0 0.0
    %310 = vmatpush1.xpose.msra.mxu0 0.0
    %311 = vmatprep.subr.mxu0 0.0
    %312 = vmatpush1.xpose.msra.mxu0 0.0
    %313 = vmatprep.subr.mxu0 0.0
    %314 = vmatpush1.xpose.msra.mxu0 0.0
    %315 = vmatprep.subr.mxu0 0.0
    %316 = vmatpush1.xpose.msra.mxu0 0.0
    %317 = vmatprep.mubr.f32.mxu0 0.0
    %318 = vmatmul.mubr.f32.gmra.mrb[0].mxu0 %v239
    %v319 = vpop.f32.mrb[0].mxu0
    %v320 = vadd.f32 0.0, %v319
    %v321 = vpop.f32.mrb[0].mxu0
    %322 = vmatprep.mubr.f32.mxu0 0.0
    %323 = vmatmul.mubr.f32.gmra.mrb[0].mxu0 %v242
    %v324 = vpop.f32.mrb[0].mxu0
    %v325 = vadd.f32 0.0, %v324
    %v326 = vpop.f32.mrb[0].mxu0
    %327 = vmatprep.mubr.f32.mxu0 0.0
    %328 = vmatmul.mubr.f32.gmra.mrb[0].mxu0 %v245
    %v329 = vpop.f32.mrb[0].mxu0
    %v330 = vadd.f32 0.0, %v329
    %v331 = vpop.f32.mrb[0].mxu0
    %332 = vmatprep.mubr.f32.mxu0 0.0
    %333 = vmatmul.mubr.f32.gmra.mrb[0].mxu0 %v248
    %v334 = vpop.f32.mrb[0].mxu0
    %v335 = vadd.f32 0.0, %v334
    %v336 = vpop.f32.mrb[0].mxu0
    %337 = vdwg.mxu0
    %v338 = vld [vmem:[%s10] sm:$0xff]
    %v339 = vld [vmem:[%s10 + $0x8] sm:$0xff]
    %v340 = vld [vmem:[%s10 + $0x10] sm:$0xff]
    %v341 = vld [vmem:[%s10 + $0x18] sm:$0xff]
    %v343 = vsel %vm149, %v325, 0
    %345 = vmatprep.subr.mxu0 0.0
    %346 = vmatpush1.msra.mxu0 %v339
    %347 = vmatprep.subr.mxu0 0.0
    %348 = vmatpush1.msra.mxu0 0.0
    %349 = vmatprep.subr.mxu0 0.0
    %350 = vmatpush1.msra.mxu0 0.0
    %351 = vmatprep.subr.mxu0 0.0
    %352 = vmatpush1.msra.mxu0 0.0
    %353 = vmatprep.subr.mxu0 0.0
    %354 = vmatpush1.msra.mxu0 0.0
    %355 = vmatprep.subr.mxu0 0.0
    %356 = vmatpush1.msra.mxu0 0.0
    %357 = vmatprep.subr.mxu0 0.0
    %358 = vmatpush1.msra.mxu0 0.0
    %359 = vmatprep.subr.mxu0 0.0
    %360 = vmatpush1.msra.mxu0 0.0
    %361 = vmatprep.subr.mxu0 0.0
    %362 = vmatpush1.msra.mxu0 0.0
    %363 = vmatprep.subr.mxu0 0.0
    %364 = vmatpush1.msra.mxu0 0.0
    %365 = vmatprep.subr.mxu0 0.0
    %366 = vmatpush1.msra.mxu0 0.0
    %367 = vmatprep.subr.mxu0 0.0
    %368 = vmatpush1.msra.mxu0 0.0
    %369 = vmatprep.subr.mxu0 0.0
    %370 = vmatpush1.msra.mxu0 0.0
    %371 = vmatprep.subr.mxu0 0.0
    %372 = vmatpush1.msra.mxu0 0.0
    %373 = vmatprep.subr.mxu0 0.0
    %374 = vmatpush1.msra.mxu0 0.0
    %375 = vmatprep.subr.mxu0 0.0
    %376 = vmatpush1.msra.mxu0 0.0
    %377 = vmatprep.subr.mxu0 0.0
    %378 = vmatpush1.msra.mxu0 0.0
    %379 = vmatprep.subr.mxu0 0.0
    %380 = vmatpush1.msra.mxu0 0.0
    %381 = vmatprep.subr.mxu0 0.0
    %382 = vmatpush1.msra.mxu0 0.0
    %383 = vmatprep.subr.mxu0 0.0
    %384 = vmatpush1.msra.mxu0 0.0
    %385 = vmatprep.subr.mxu0 0.0
    %386 = vmatpush1.msra.mxu0 0.0
    %387 = vmatprep.subr.mxu0 0.0
    %388 = vmatpush1.msra.mxu0 0.0
    %389 = vmatprep.subr.mxu0 0.0
    %390 = vmatpush1.msra.mxu0 0.0
    %391 = vmatprep.subr.mxu0 0.0
    %392 = vmatpush1.msra.mxu0 0.0
    %393 = vmatprep.subr.mxu0 0.0
    %394 = vmatpush1.msra.mxu0 0.0
    %395 = vmatprep.subr.mxu0 0.0
    %396 = vmatpush1.msra.mxu0 0.0
    %397 = vmatprep.subr.mxu0 0.0
    %398 = vmatpush1.msra.mxu0 0.0
    %399 = vmatprep.subr.mxu0 0.0
    %400 = vmatpush1.msra.mxu0 0.0
    %401 = vmatprep.subr.mxu0 0.0
    %402 = vmatpush1.msra.mxu0 0.0
    %403 = vmatprep.subr.mxu0 0.0
    %404 = vmatpush1.msra.mxu0 0.0
    %405 = vmatprep.subr.mxu0 0.0
    %406 = vmatpush1.msra.mxu0 0.0
    %407 = vmatprep.subr.mxu0 0.0
    %408 = vmatpush1.msra.mxu0 0.0
    %409 = vmatprep.mubr.f32.mxu0 0.0
    %410 = vmatmul.mubr.f32.gmra.mrb[0].mxu0 %v343
    %v411 = vpop.f32.mrb[0].mxu0
    %v412 = vadd.f32 0.0, %v411
    %v413 = vpop.f32.mrb[0].mxu0
    %414 = vdwg.mxu0
    %v416 = vsel %vm149, %v330, 0
    %418 = vmatprep.subr.mxu0 0.0
    %419 = vmatpush1.msra.mxu0 %v340
    %420 = vmatprep.subr.mxu0 0.0
    %421 = vmatpush1.msra.mxu0 0.0
    %422 = vmatprep.subr.mxu0 0.0
    %423 = vmatpush1.msra.mxu0 0.0
    %424 = vmatprep.subr.mxu0 0.0
    %425 = vmatpush1.msra.mxu0 0.0
    %426 = vmatprep.subr.mxu0 0.0
    %427 = vmatpush1.msra.mxu0 0.0
    %428 = vmatprep.subr.mxu0 0.0
    %429 = vmatpush1.msra.mxu0 0.0
    %430 = vmatprep.subr.mxu0 0.0
    %431 = vmatpush1.msra.mxu0 0.0
    %432 = vmatprep.subr.mxu0 0.0
    %433 = vmatpush1.msra.mxu0 0.0
    %434 = vmatprep.subr.mxu0 0.0
    %435 = vmatpush1.msra.mxu0 0.0
    %436 = vmatprep.subr.mxu0 0.0
    %437 = vmatpush1.msra.mxu0 0.0
    %438 = vmatprep.subr.mxu0 0.0
    %439 = vmatpush1.msra.mxu0 0.0
    %440 = vmatprep.subr.mxu0 0.0
    %441 = vmatpush1.msra.mxu0 0.0
    %442 = vmatprep.subr.mxu0 0.0
    %443 = vmatpush1.msra.mxu0 0.0
    %444 = vmatprep.subr.mxu0 0.0
    %445 = vmatpush1.msra.mxu0 0.0
    %446 = vmatprep.subr.mxu0 0.0
    %447 = vmatpush1.msra.mxu0 0.0
    %448 = vmatprep.subr.mxu0 0.0
    %449 = vmatpush1.msra.mxu0 0.0
    %450 = vmatprep.subr.mxu0 0.0
    %451 = vmatpush1.msra.mxu0 0.0
    %452 = vmatprep.subr.mxu0 0.0
    %453 = vmatpush1.msra.mxu0 0.0
    %454 = vmatprep.subr.mxu0 0.0
    %455 = vmatpush1.msra.mxu0 0.0
    %456 = vmatprep.subr.mxu0 0.0
    %457 = vmatpush1.msra.mxu0 0.0
    %458 = vmatprep.subr.mxu0 0.0
    %459 = vmatpush1.msra.mxu0 0.0
    %460 = vmatprep.subr.mxu0 0.0
    %461 = vmatpush1.msra.mxu0 0.0
    %462 = vmatprep.subr.mxu0 0.0
    %463 = vmatpush1.msra.mxu0 0.0
    %464 = vmatprep.subr.mxu0 0.0
    %465 = vmatpush1.msra.mxu0 0.0
    %466 = vmatprep.subr.mxu0 0.0
    %467 = vmatpush1.msra.mxu0 0.0
    %468 = vmatprep.subr.mxu0 0.0
    %469 = vmatpush1.msra.mxu0 0.0
    %470 = vmatprep.subr.mxu0 0.0
    %471 = vmatpush1.msra.mxu0 0.0
    %472 = vmatprep.subr.mxu0 0.0
    %473 = vmatpush1.msra.mxu0 0.0
    %474 = vmatprep.subr.mxu0 0.0
    %475 = vmatpush1.msra.mxu0 0.0
    %476 = vmatprep.subr.mxu0 0.0
    %477 = vmatpush1.msra.mxu0 0.0
    %478 = vmatprep.subr.mxu0 0.0
    %479 = vmatpush1.msra.mxu0 0.0
    %480 = vmatprep.subr.mxu0 0.0
    %481 = vmatpush1.msra.mxu0 0.0
    %482 = vmatprep.mubr.f32.mxu0 0.0
    %483 = vmatmul.mubr.f32.gmra.mrb[0].mxu0 %v416
    %v484 = vpop.f32.mrb[0].mxu0
    %v485 = vadd.f32 0.0, %v484
    %v486 = vpop.f32.mrb[0].mxu0
    %487 = vdwg.mxu0
    %v489 = vsel %vm149, %v335, 0
    %491 = vmatprep.subr.mxu0 0.0
    %492 = vmatpush1.msra.mxu0 %v341
    %493 = vmatprep.subr.mxu0 0.0
    %494 = vmatpush1.msra.mxu0 0.0
    %495 = vmatprep.subr.mxu0 0.0
    %496 = vmatpush1.msra.mxu0 0.0
    %497 = vmatprep.subr.mxu0 0.0
    %498 = vmatpush1.msra.mxu0 0.0
    %499 = vmatprep.subr.mxu0 0.0
    %500 = vmatpush1.msra.mxu0 0.0
    %501 = vmatprep.subr.mxu0 0.0
    %502 = vmatpush1.msra.mxu0 0.0
    %503 = vmatprep.subr.mxu0 0.0
    %504 = vmatpush1.msra.mxu0 0.0
    %505 = vmatprep.subr.mxu0 0.0
    %506 = vmatpush1.msra.mxu0 0.0
    %507 = vmatprep.subr.mxu0 0.0
    %508 = vmatpush1.msra.mxu0 0.0
    %509 = vmatprep.subr.mxu0 0.0
    %510 = vmatpush1.msra.mxu0 0.0
    %511 = vmatprep.subr.mxu0 0.0
    %512 = vmatpush1.msra.mxu0 0.0
    %513 = vmatprep.subr.mxu0 0.0
    %514 = vmatpush1.msra.mxu0 0.0
    %515 = vmatprep.subr.mxu0 0.0
    %516 = vmatpush1.msra.mxu0 0.0
    %517 = vmatprep.subr.mxu0 0.0
    %518 = vmatpush1.msra.mxu0 0.0
    %519 = vmatprep.subr.mxu0 0.0
    %520 = vmatpush1.msra.mxu0 0.0
    %521 = vmatprep.subr.mxu0 0.0
    %522 = vmatpush1.msra.mxu0 0.0
    %523 = vmatprep.subr.mxu0 0.0
    %524 = vmatpush1.msra.mxu0 0.0
    %525 = vmatprep.subr.mxu0 0.0
    %526 = vmatpush1.msra.mxu0 0.0
    %527 = vmatprep.subr.mxu0 0.0
    %528 = vmatpush1.msra.mxu0 0.0
    %529 = vmatprep.subr.mxu0 0.0
    %530 = vmatpush1.msra.mxu0 0.0
    %531 = vmatprep.subr.mxu0 0.0
    %532 = vmatpush1.msra.mxu0 0.0
    %533 = vmatprep.subr.mxu0 0.0
    %534 = vmatpush1.msra.mxu0 0.0
    %535 = vmatprep.subr.mxu0 0.0
    %536 = vmatpush1.msra.mxu0 0.0
    %537 = vmatprep.subr.mxu0 0.0
    %538 = vmatpush1.msra.mxu0 0.0
    %539 = vmatprep.subr.mxu0 0.0
    %540 = vmatpush1.msra.mxu0 0.0
    %541 = vmatprep.subr.mxu0 0.0
    %542 = vmatpush1.msra.mxu0 0.0
    %543 = vmatprep.subr.mxu0 0.0
    %544 = vmatpush1.msra.mxu0 0.0
    %545 = vmatprep.subr.mxu0 0.0
    %546 = vmatpush1.msra.mxu0 0.0
    %547 = vmatprep.subr.mxu0 0.0
    %548 = vmatpush1.msra.mxu0 0.0
    %549 = vmatprep.subr.mxu0 0.0
    %550 = vmatpush1.msra.mxu0 0.0
    %551 = vmatprep.subr.mxu0 0.0
    %552 = vmatpush1.msra.mxu0 0.0
    %553 = vmatprep.subr.mxu0 0.0
    %554 = vmatpush1.msra.mxu0 0.0
    %555 = vmatprep.mubr.f32.mxu0 0.0
    %556 = vmatmul.mubr.f32.gmra.mrb[0].mxu0 %v489
    %v557 = vpop.f32.mrb[0].mxu0
    %v558 = vadd.f32 0.0, %v557
    %v559 = vpop.f32.mrb[0].mxu0
    %560 = vdwg.mxu0
    %v562 = vsel %vm149, %v320, 0
    %564 = vmatprep.subr.mxu0 0.0
    %565 = vmatpush1.msra.mxu0 %v338
    %566 = vmatprep.subr.mxu0 0.0
    %567 = vmatpush1.msra.mxu0 0.0
    %568 = vmatprep.subr.mxu0 0.0
    %569 = vmatpush1.msra.mxu0 0.0
    %570 = vmatprep.subr.mxu0 0.0
    %571 = vmatpush1.msra.mxu0 0.0
    %572 = vmatprep.subr.mxu0 0.0
    %573 = vmatpush1.msra.mxu0 0.0
    %574 = vmatprep.subr.mxu0 0.0
    %575 = vmatpush1.msra.mxu0 0.0
    %576 = vmatprep.subr.mxu0 0.0
    %577 = vmatpush1.msra.mxu0 0.0
    %578 = vmatprep.subr.mxu0 0.0
    %579 = vmatpush1.msra.mxu0 0.0
    %580 = vmatprep.subr.mxu0 0.0
    %581 = vmatpush1.msra.mxu0 0.0
    %582 = vmatprep.subr.mxu0 0.0
    %583 = vmatpush1.msra.mxu0 0.0
    %584 = vmatprep.subr.mxu0 0.0
    %585 = vmatpush1.msra.mxu0 0.0
    %586 = vmatprep.subr.mxu0 0.0
    %587 = vmatpush1.msra.mxu0 0.0
    %588 = vmatprep.subr.mxu0 0.0
    %589 = vmatpush1.msra.mxu0 0.0
    %590 = vmatprep.subr.mxu0 0.0
    %591 = vmatpush1.msra.mxu0 0.0
    %592 = vmatprep.subr.mxu0 0.0
    %593 = vmatpush1.msra.mxu0 0.0
    %594 = vmatprep.subr.mxu0 0.0
    %595 = vmatpush1.msra.mxu0 0.0
    %596 = vmatprep.subr.mxu0 0.0
    %597 = vmatpush1.msra.mxu0 0.0
    %598 = vmatprep.subr.mxu0 0.0
    %599 = vmatpush1.msra.mxu0 0.0
    %600 = vmatprep.subr.mxu0 0.0
    %601 = vmatpush1.msra.mxu0 0.0
    %602 = vmatprep.subr.mxu0 0.0
    %603 = vmatpush1.msra.mxu0 0.0
    %604 = vmatprep.subr.mxu0 0.0
    %605 = vmatpush1.msra.mxu0 0.0
    %606 = vmatprep.subr.mxu0 0.0
    %607 = vmatpush1.msra.mxu0 0.0
    %608 = vmatprep.subr.mxu0 0.0
    %609 = vmatpush1.msra.mxu0 0.0
    %610 = vmatprep.subr.mxu0 0.0
    %611 = vmatpush1.msra.mxu0 0.0
    %612 = vmatprep.subr.mxu0 0.0
    %613 = vmatpush1.msra.mxu0 0.0
    %614 = vmatprep.subr.mxu0 0.0
    %615 = vmatpush1.msra.mxu0 0.0
    %616 = vmatprep.subr.mxu0 0.0
    %617 = vmatpush1.msra.mxu0 0.0
    %618 = vmatprep.subr.mxu0 0.0
    %619 = vmatpush1.msra.mxu0 0.0
    %620 = vmatprep.subr.mxu0 0.0
    %621 = vmatpush1.msra.mxu0 0.0
    %622 = vmatprep.subr.mxu0 0.0
    %623 = vmatpush1.msra.mxu0 0.0
    %624 = vmatprep.subr.mxu0 0.0
    %625 = vmatpush1.msra.mxu0 0.0
    %626 = vmatprep.subr.mxu0 0.0
    %627 = vmatpush1.msra.mxu0 0.0
    %628 = vmatprep.mubr.f32.mxu0 0.0
    %629 = vmatmul.mubr.f32.gmra.mrb[0].mxu0 %v562
    %v630 = vpop.f32.mrb[0].mxu0
    %v631 = vadd.f32 %v412, %v630
    %v632 = vpop.f32.mrb[0].mxu0
    %633 = vdwg.mxu0
    %v634 = vadd.f32 %v631, %v485
    %v635 = vadd.f32 %v634, %v558
    %v636 = vadd.f32 %v73, %v635
    %v637 = vld [vmem:[%s3] sm:$0x1]
    %v638 = vld [vmem:[%s4] sm:$0x1]
    %v639 = vsel %vm45, %v636, 0.0
    %640 = vadd.xlane.f32.xlu0 %v639
    %v641 = vpop.xlane.xlu0 %640
    %v642 = vmul.f32 %v641, %v49
    %v643 = vsub.f32 %v636, %v642
    %v644 = vmul.f32 %v643, %v643
    %v645 = vsel %vm45, %v644, 0.0
    %646 = vadd.xlane.f32.xlu0 %v645
    %v647 = vpop.xlane.xlu0 %646
    %v648 = vmul.f32 %v647, %v49
    %v649 = vadd.f32 %v648, 1e-05
    %v650 = vrsqrt.pop %v649
    %v651 = vmul.f32 %v643, %v650
    %v653 = vlaneseq
    %v654 = vshrl.u32 %v653, 7
    %v655 = vsub.s32 0, %v654
    %v656 = vrot.slane %v637, %v655
    %v658 = vmul.f32 %v651, %v656
    %v660 = vlaneseq
    %v661 = vshrl.u32 %v660, 7
    %v662 = vsub.s32 0, %v661
    %v663 = vrot.slane %v638, %v662
    %v665 = vadd.f32 %v658, %v663
    %v666 = vld [vmem:[%s5] sm:$0xff]
    %v667 = vld [vmem:[%s5 + $0x8] sm:$0xff]
    %v668 = vld [vmem:[%s5 + $0x10] sm:$0xff]
    %v669 = vld [vmem:[%s5 + $0x18] sm:$0xff]
    %v670 = vld [vmem:[%s6] sm:$0x1]
    %v672 = vlaneseq
    %v673 = vshrl.u32 %v672, 7
    %v674 = vsub.s32 0, %v673
    %v675 = vrot.slane %v670, %v674
    %v678 = vsel %vm45, %v665, 0
    %680 = vmatprep.subr.mxu0 0.0
    %681 = vmatpush1.msra.mxu0 %v666
    %682 = vmatprep.subr.mxu0 0.0
    %683 = vmatpush1.msra.mxu0 %v667
    %684 = vmatprep.subr.mxu0 0.0
    %685 = vmatpush1.msra.mxu0 %v668
    %686 = vmatprep.subr.mxu0 0.0
    %687 = vmatpush1.msra.mxu0 %v669
    %688 = vmatprep.subr.mxu0 0.0
    %689 = vmatpush1.msra.mxu0 0.0
    %690 = vmatprep.subr.mxu0 0.0
    %691 = vmatpush1.msra.mxu0 0.0
    %692 = vmatprep.subr.mxu0 0.0
    %693 = vmatpush1.msra.mxu0 0.0
    %694 = vmatprep.subr.mxu0 0.0
    %695 = vmatpush1.msra.mxu0 0.0
    %696 = vmatprep.subr.mxu0 0.0
    %697 = vmatpush1.msra.mxu0 0.0
    %698 = vmatprep.subr.mxu0 0.0
    %699 = vmatpush1.msra.mxu0 0.0
    %700 = vmatprep.subr.mxu0 0.0
    %701 = vmatpush1.msra.mxu0 0.0
    %702 = vmatprep.subr.mxu0 0.0
    %703 = vmatpush1.msra.mxu0 0.0
    %704 = vmatprep.subr.mxu0 0.0
    %705 = vmatpush1.msra.mxu0 0.0
    %706 = vmatprep.subr.mxu0 0.0
    %707 = vmatpush1.msra.mxu0 0.0
    %708 = vmatprep.subr.mxu0 0.0
    %709 = vmatpush1.msra.mxu0 0.0
    %710 = vmatprep.subr.mxu0 0.0
    %711 = vmatpush1.msra.mxu0 0.0
    %712 = vmatprep.subr.mxu0 0.0
    %713 = vmatpush1.msra.mxu0 0.0
    %714 = vmatprep.subr.mxu0 0.0
    %715 = vmatpush1.msra.mxu0 0.0
    %716 = vmatprep.subr.mxu0 0.0
    %717 = vmatpush1.msra.mxu0 0.0
    %718 = vmatprep.subr.mxu0 0.0
    %719 = vmatpush1.msra.mxu0 0.0
    %720 = vmatprep.subr.mxu0 0.0
    %721 = vmatpush1.msra.mxu0 0.0
    %722 = vmatprep.subr.mxu0 0.0
    %723 = vmatpush1.msra.mxu0 0.0
    %724 = vmatprep.subr.mxu0 0.0
    %725 = vmatpush1.msra.mxu0 0.0
    %726 = vmatprep.subr.mxu0 0.0
    %727 = vmatpush1.msra.mxu0 0.0
    %728 = vmatprep.subr.mxu0 0.0
    %729 = vmatpush1.msra.mxu0 0.0
    %730 = vmatprep.subr.mxu0 0.0
    %731 = vmatpush1.msra.mxu0 0.0
    %732 = vmatprep.subr.mxu0 0.0
    %733 = vmatpush1.msra.mxu0 0.0
    %734 = vmatprep.subr.mxu0 0.0
    %735 = vmatpush1.msra.mxu0 0.0
    %736 = vmatprep.subr.mxu0 0.0
    %737 = vmatpush1.msra.mxu0 0.0
    %738 = vmatprep.subr.mxu0 0.0
    %739 = vmatpush1.msra.mxu0 0.0
    %740 = vmatprep.subr.mxu0 0.0
    %741 = vmatpush1.msra.mxu0 0.0
    %742 = vmatprep.subr.mxu0 0.0
    %743 = vmatpush1.msra.mxu0 0.0
    %744 = vmatprep.mubr.f32.mxu0 0.0
    %745 = vmatmul.mubr.f32.gmra.mrb[0].mxu0 %v678
    %v746 = vpop.f32.mrb[0].mxu0
    %v747 = vadd.f32 %v675, %v746
    %v748 = vpop.f32.mrb[0].mxu0
    %749 = vdwg.mxu0
    %v750 = vmul.f32 %v747, 1.702
    %v751 = vxor.u32 %v750, 2147483648
    %v752 = vmul.f32 %v751, 1.442695
    %v753 = vpow.pop %v752
    %v754 = vadd.f32 %v753, 1.0
    %v755 = vrcp.pop %v754
    %v756 = vmul.f32 1.0, %v755
    %v757 = vmul.f32 %v747, %v756
    %v758 = vld [vmem:[%s7] sm:$0xff]
    %v759 = vld [vmem:[%s7 + $0x8] sm:$0xff]
    %v760 = vld [vmem:[%s7 + $0x10] sm:$0xff]
    %v761 = vld [vmem:[%s7 + $0x18] sm:$0xff]
    %v762 = vld [vmem:[%s7 + $0x20] sm:$0xff]
    %v763 = vld [vmem:[%s7 + $0x28] sm:$0xff]
    %v764 = vld [vmem:[%s7 + $0x30] sm:$0xff]
    %v765 = vld [vmem:[%s7 + $0x38] sm:$0xff]
    %v766 = vld [vmem:[%s7 + $0x40] sm:$0xff]
    %v767 = vld [vmem:[%s7 + $0x48] sm:$0xff]
    %v768 = vld [vmem:[%s7 + $0x50] sm:$0xff]
    %v769 = vld [vmem:[%s7 + $0x58] sm:$0xff]
    %v770 = vld [vmem:[%s7 + $0x60] sm:$0xff]
    %v771 = vld [vmem:[%s7 + $0x68] sm:$0xff]
    %v772 = vld [vmem:[%s7 + $0x70] sm:$0xff]
    %v773 = vld [vmem:[%s7 + $0x78] sm:$0xff]
    %774 = vmatprep.subr.mxu0 0.0
    %775 = vmatpush1.msra.mxu0 %v758
    %776 = vmatprep.subr.mxu0 0.0
    %777 = vmatpush1.msra.mxu0 %v759
    %778 = vmatprep.subr.mxu0 0.0
    %779 = vmatpush1.msra.mxu0 %v760
    %780 = vmatprep.subr.mxu0 0.0
    %781 = vmatpush1.msra.mxu0 %v761
    %782 = vmatprep.subr.mxu0 0.0
    %783 = vmatpush1.msra.mxu0 %v762
    %784 = vmatprep.subr.mxu0 0.0
    %785 = vmatpush1.msra.mxu0 %v763
    %786 = vmatprep.subr.mxu0 0.0
    %787 = vmatpush1.msra.mxu0 %v764
    %788 = vmatprep.subr.mxu0 0.0
    %789 = vmatpush1.msra.mxu0 %v765
    %790 = vmatprep.subr.mxu0 0.0
    %791 = vmatpush1.msra.mxu0 %v766
    %792 = vmatprep.subr.mxu0 0.0
    %793 = vmatpush1.msra.mxu0 %v767
    %794 = vmatprep.subr.mxu0 0.0
    %795 = vmatpush1.msra.mxu0 %v768
    %796 = vmatprep.subr.mxu0 0.0
    %797 = vmatpush1.msra.mxu0 %v769
    %798 = vmatprep.subr.mxu0 0.0
    %799 = vmatpush1.msra.mxu0 %v770
    %800 = vmatprep.subr.mxu0 0.0
    %801 = vmatpush1.msra.mxu0 %v771
    %802 = vmatprep.subr.mxu0 0.0
    %803 = vmatpush1.msra.mxu0 %v772
    %804 = vmatprep.subr.mxu0 0.0
    %805 = vmatpush1.msra.mxu0 %v773
    %806 = vmatprep.subr.mxu0 0.0
    %807 = vmatpush1.msra.mxu0 0.0
    %808 = vmatprep.subr.mxu0 0.0
    %809 = vmatpush1.msra.mxu0 0.0
    %810 = vmatprep.subr.mxu0 0.0
    %811 = vmatpush1.msra.mxu0 0.0
    %812 = vmatprep.subr.mxu0 0.0
    %813 = vmatpush1.msra.mxu0 0.0
    %814 = vmatprep.subr.mxu0 0.0
    %815 = vmatpush1.msra.mxu0 0.0
    %816 = vmatprep.subr.mxu0 0.0
    %817 = vmatpush1.msra.mxu0 0.0
    %818 = vmatprep.subr.mxu0 0.0
    %819 = vmatpush1.msra.mxu0 0.0
    %820 = vmatprep.subr.mxu0 0.0
    %821 = vmatpush1.msra.mxu0 0.0
    %822 = vmatprep.subr.mxu0 0.0
    %823 = vmatpush1.msra.mxu0 0.0
    %824 = vmatprep.subr.mxu0 0.0
    %825 = vmatpush1.msra.mxu0 0.0
    %826 = vmatprep.subr.mxu0 0.0
    %827 = vmatpush1.msra.mxu0 0.0
    %828 = vmatprep.subr.mxu0 0.0
    %829 = vmatpush1.msra.mxu0 0.0
    %830 = vmatprep.subr.mxu0 0.0
    %831 = vmatpush1.msra.mxu0 0.0
    %832 = vmatprep.subr.mxu0 0.0
    %833 = vmatpush1.msra.mxu0 0.0
    %834 = vmatprep.subr.mxu0 0.0
    %835 = vmatpush1.msra.mxu0 0.0
    %836 = vmatprep.subr.mxu0 0.0
    %837 = vmatpush1.msra.mxu0 0.0
    %838 = vmatprep.mubr.f32.mxu0 0.0
    %839 = vmatmul.mubr.f32.gmra.mrb[0].mxu0 %v757
    %v840 = vpop.f32.mrb[0].mxu0
    %v841 = vadd.f32 0.0, %v840
    %v842 = vpop.f32.mrb[0].mxu0
    %843 = vdwg.mxu0
    %v844 = vadd.f32 %v636, %v841
    %v845 = vld [vmem:[%s8] sm:$0x1]
    %v847 = vlaneseq
    %v848 = vshrl.u32 %v847, 7
    %v849 = vsub.s32 0, %v848
    %v850 = vrot.slane %v845, %v849
    %v852 = vadd.f32 %v844, %v850
    %853 = vst.msk [vmem:[#allocation2] sm:$0xff] %vm45, %v852
    // Predicated region
    $region46: #{_transformer_forward.1} parent=1 // pred_check
      _
    $region47: #{_transformer_forward.1} parent=1 // pred_check_branch
      %855 = sbr.rel (0) target = $region49
    $region48: #{_transformer_forward.1} parent=1 // pred_region
      %s857 = ssub.s32 128, 128
      %858 = vsyncadd [#allocation3], %s857
      %s860 = sshll.u32 [#allocation2], 4
      %s861 = int_to_ptr.vmem [resolvable:$true] %s860
      %863 = dma.vmem_to_hbm [thread:$0]  %s861, 128, %s11, [#allocation3]
    $region49: #{_transformer_forward.1} parent=1 // pred_fallthru
      _
    // Predicated region
    $region50: #{_transformer_forward.1} parent=1 // pred_check
      _
    $region51: #{_transformer_forward.1} parent=1 // pred_check_branch
      %865 = sbr.rel (0) target = $region53
    $region52: #{_transformer_forward.1} parent=1 // pred_region
      %s867 = ssub.s32 128, 128
      %868 = vsyncadd [#allocation5], %s867
      %s870 = sshll.u32 [#allocation4], 4
      %s871 = int_to_ptr.vmem [resolvable:$true] %s870
      %873 = dma.vmem_to_hbm [thread:$0]  %s871, 128, %s12, [#allocation5]
    $region53: #{_transformer_forward.1} parent=1 // pred_fallthru
      _
    // Predicated region
    $region54: #{_transformer_forward.1} parent=1 // pred_check
      _
    $region55: #{_transformer_forward.1} parent=1 // pred_check_branch
      %875 = sbr.rel (0) target = $region57
    $region56: #{_transformer_forward.1} parent=1 // pred_region
      %876 = dma.done [#allocation3], 128
    $region57: #{_transformer_forward.1} parent=1 // pred_fallthru
      _
    // Predicated region
    $region58: #{_transformer_forward.1} parent=1 // pred_check
      _
    $region59: #{_transformer_forward.1} parent=1 // pred_check_branch
      %878 = sbr.rel (0) target = $region61
    $region60: #{_transformer_forward.1} parent=1 // pred_region
      %879 = dma.done [#allocation5], 128
    $region61: #{_transformer_forward.1} parent=1 // pred_fallthru
      _
    %880 = vsyncpa [#allocation3], 1
    %881 = vsyncpa [#allocation5], 1

</llo_original>
